<compile_context>
chip_gen: v7x
topology: tpu7x:2x2x1
jax: 0.10.0
libtpu: 0.0.40
codegen_flags: <defaults>
</compile_context>

<pallas_src>
import functools
import math

import jax
import jax.numpy as jnp
from jax import lax
from jax.experimental import pallas as pl
from jax.experimental.pallas import tpu as pltpu


def _round_up(v, m):
    return (v + m - 1) // m * m


def _linear_kernel(x_ref, w_ref, *rest, nk: int, norm: bool, use_bias: bool):
    # x_ref   : (tm, tk)   native dtype
    # w_ref   : (tk, tn)   native dtype (pre-transposed weight tile)
    # inv_ref : (tm, 1)    f32  rsqrt(sum(x^2)) per row            [if norm]
    # b_ref   : (1, tn)    f32  bias                               [if use_bias]
    # o_ref   : (tm, tn)
    # acc_ref : (tm, tn)   f32 accumulator (used only when nk > 1)
    idx = 0
    inv_ref = None
    b_ref = None
    if norm:
        inv_ref = rest[idx]
        idx += 1
    if use_bias:
        b_ref = rest[idx]
        idx += 1
    o_ref, acc_ref = rest[idx], rest[idx + 1]

    k = pl.program_id(2)

    # Plain row-major x (tm,tk) @ w (tk,tn): straight MXU push, no transpose.
    part = jnp.dot(x_ref[...], w_ref[...], preferred_element_type=jnp.float32)

    def finalize(y):
        if norm:
            y = y * inv_ref[...]          # (tm,1) broadcast, one VPU multiply
        if use_bias:
            y = y + b_ref[...]            # bias kept in f32
        o_ref[...] = y.astype(o_ref.dtype)

    if nk == 1:
        # Single K tile: no accumulator round-trip at all.
        finalize(part)
    else:
        @pl.when(k == 0)
        def _():
            acc_ref[...] = part           # direct write, no zero + RMW

        @pl.when(jnp.logical_and(k > 0, k < nk - 1))
        def _():
            acc_ref[...] += part

        @pl.when(k == nk - 1)
        def _():
            finalize(acc_ref[...] + part)  # skip the final acc writeback


def pallas_linear(x, weight, bias=None, *, norm=True, tm=None, tn=None, tk=None):
    """x: (N, C_in); weight: (C_out, C_in) PyTorch layout; bias: (C_out,) or None."""
    N, Cin = x.shape
    Cout, Cin_w = weight.shape
    assert Cin == Cin_w
    use_bias = bias is not None

    itemsize = jnp.dtype(x.dtype).itemsize
    sub = {4: 8, 2: 16, 1: 32}.get(itemsize, 8)   # dtype-aware sublane packing

    # Tile sizes: lane-dense output (tn multiple of 128), sublane-aligned M,
    # MXU-friendly K.  Large caps keep grid-step overhead and accumulator
    # passes low; the working set is still well under VMEM on v5e/v6e/v7x.
    tm = tm or min(512, _round_up(N, sub))
    tn = tn or min(1024, _round_up(Cout, 128))
    tk = tk or min(1024, _round_up(Cin, 128))

    Mp, Np, Kp = _round_up(N, tm), _round_up(Cout, tn), _round_up(Cin, tk)
    nk = Kp // tk

    xp = x if (Mp == N and Kp == Cin) else jnp.pad(
        x, ((0, Mp - N), (0, Kp - Cin)))

    # Pre-transpose weight once in the wrapper: (C_in, C_out) -> pad (Kp, Np).
    wt = weight.T
    wp = wt if (Kp == Cin and Np == Cout) else jnp.pad(
        wt, ((0, Kp - Cin), (0, Np - Cout)))

    in_specs = [
        pl.BlockSpec((tm, tk), lambda i, j, k: (i, k)),   # x tile
        pl.BlockSpec((tk, tn), lambda i, j, k: (k, j)),   # weight tile (pre-T)
    ]
    args = [xp, wp]

    if norm:
        xf = x.astype(jnp.float32)
        inv = lax.rsqrt(jnp.sum(xf * xf, axis=1, keepdims=True))   # (N, 1) f32
        invp = inv if Mp == N else jnp.pad(inv, ((0, Mp - N), (0, 0)))
        in_specs.append(pl.BlockSpec((tm, 1), lambda i, j, k: (i, 0)))
        args.append(invp)

    if use_bias:
        bf = bias.astype(jnp.float32)
        bp = bf if Np == Cout else jnp.pad(bf, (0, Np - Cout))
        in_specs.append(pl.BlockSpec((1, tn), lambda i, j, k: (0, j)))
        args.append(bp.reshape(1, Np))

    # Explicit VMEM budget (double-buffered inputs/outputs + acc scratch),
    # capped at v7x physical VMEM.
    vmem_bytes = (2 * tm * tk * itemsize     # x
                  + 2 * tk * tn * itemsize   # w
                  + 2 * tm * tn * itemsize   # out
                  + tm * tn * 4              # acc scratch
                  + 2 * (tm + tn) * 4)       # inv_norm + bias
    vmem_limit = min(max(int(vmem_bytes * 2), 32 << 20), 64 << 20)

    kernel = functools.partial(
        _linear_kernel, nk=nk, norm=norm, use_bias=use_bias)

    out = pl.pallas_call(
        kernel,
        out_shape=jax.ShapeDtypeStruct((Mp, Np), x.dtype),
        grid_spec=pltpu.PrefetchScalarGridSpec(
            num_scalar_prefetch=0,
            grid=(Mp // tm, Np // tn, nk),
            in_specs=in_specs,
            out_specs=pl.BlockSpec((tm, tn), lambda i, j, k: (i, j)),
            scratch_shapes=[
                pltpu.VMEM((tm, tn), jnp.float32),   # matmul accumulator
            ],
        ),
        compiler_params=pltpu.CompilerParams(
            dimension_semantics=("parallel", "parallel", "arbitrary"),
            vmem_limit_bytes=vmem_limit),
    )(*args)

    return out[:N, :Cout]


def init_params(key, in_channel, out_channel):
    """weight: xavier_uniform_ gain=0.01; bias: PyTorch nn.Linear default."""
    kw, kb = jax.random.split(key)
    a = 0.01 * math.sqrt(6.0 / (in_channel + out_channel))
    weight = jax.random.uniform(kw, (out_channel, in_channel),
                                minval=-a, maxval=a, dtype=jnp.float32)
    bb = 1.0 / math.sqrt(in_channel)
    bias = jax.random.uniform(kb, (out_channel,),
                              minval=-bb, maxval=bb, dtype=jnp.float32)
    return weight, bias


if __name__ == "__main__":
    key = jax.random.PRNGKey(0)
    k_x, k_p, k_x2, k_x3, k_p3 = jax.random.split(key, 5)

    # Case 1: regression-head-like shapes (single grid step).
    N, C_in, C_out = 8, 32, 16
    x = jax.random.normal(k_x, (N, C_in), dtype=jnp.float32)
    weight, bias = init_params(k_p, C_in, C_out)
    y = jax.block_until_ready(pallas_linear(x, weight, bias, norm=True))
    y_ref = (x @ weight.T) / jnp.linalg.norm(x, axis=1, keepdims=True) + bias
    assert jnp.allclose(y, y_ref, atol=1e-5, rtol=1e-5)

    # Case 2: unaligned shapes exercise the padding / lane-dense tiling path.
    N2, C_in2, C_out2 = 10, 24, 6
    x2 = jax.random.normal(k_x2, (N2, C_in2), dtype=jnp.float32)
    w2, b2 = init_params(k_p, C_in2, C_out2)
    y2 = jax.block_until_ready(pallas_linear(x2, w2, b2, norm=True))
    y2_ref = (x2 @ w2.T) / jnp.linalg.norm(x2, axis=1, keepdims=True) + b2
    assert jnp.allclose(y2, y2_ref, atol=1e-5, rtol=1e-5)

    # Case 3: small shapes but explicit small tiles -> multi-step grid,
    # exercising the K accumulation path and parallel i/j axes.
    N3, C_in3, C_out3 = 16, 256, 256
    x3 = jax.random.normal(k_x3, (N3, C_in3), dtype=jnp.float32)
    w3, b3 = init_params(k_p3, C_in3, C_out3)
    y3 = jax.block_until_ready(
        pallas_linear(x3, w3, b3, norm=True, tm=8, tn=128, tk=128))
    y3_ref = (x3 @ w3.T) / jnp.linalg.norm(x3, axis=1, keepdims=True) + b3
    assert jnp.allclose(y3, y3_ref, atol=1e-4, rtol=1e-4)

    # Case 4: no-norm / no-bias variant (conditional inputs are dropped).
    y4 = jax.block_until_ready(pallas_linear(x, weight, None, norm=False))
    assert jnp.allclose(y4, x @ weight.T, atol=1e-5, rtol=1e-5)

    print("KERNEL_OK")
</pallas_src>

<mosaic_0001>
module attributes {stable_mosaic.version = 11 : i64} {
  func.func @_linear_kernel(%arg0: i32, %arg1: i32, %arg2: i32, %arg3: memref<8x128xf32, #tpu.memory_space<vmem>>, %arg4: memref<128x128xf32, #tpu.memory_space<vmem>>, %arg5: memref<8x1xf32, #tpu.memory_space<vmem>>, %arg6: memref<1x128xf32, #tpu.memory_space<vmem>>, %arg7: memref<8x128xf32, #tpu.memory_space<vmem>>, %arg8: memref<8x128xf32, #tpu.memory_space<vmem>>) attributes {dimension_semantics = [#tpu.dimension_semantics<parallel>, #tpu.dimension_semantics<parallel>, #tpu.dimension_semantics<arbitrary>], iteration_bounds = array<i64: 1, 1, 1>, scalar_prefetch = 0 : i64, scratch_operands = 1 : i64, tpu.core_type = #tpu.core_type<tc>, window_params = [{transform_indices = @transform_0, window_bounds = array<i64: 8, 128>}, {transform_indices = @transform_1, window_bounds = array<i64: 128, 128>}, {transform_indices = @transform_2, window_bounds = array<i64: 8, 1>}, {transform_indices = @transform_3, window_bounds = array<i64: 1, 128>}, {transform_indices = @transform_4, window_bounds = array<i64: 8, 128>}]} {
    %c0 = arith.constant 0 : index
    %c0_0 = arith.constant 0 : index
    %0 = vector.load %arg3[%c0, %c0_0] : memref<8x128xf32, #tpu.memory_space<vmem>>, vector<8x128xf32>
    %c0_1 = arith.constant 0 : index
    %c0_2 = arith.constant 0 : index
    %1 = vector.load %arg4[%c0_1, %c0_2] : memref<128x128xf32, #tpu.memory_space<vmem>>, vector<128x128xf32>
    %cst = arith.constant dense<0.000000e+00> : vector<8x128xf32>
    %2 = tpu.matmul %0, %1, %cst {dimension_numbers = #tpu.dot_dimension_numbers<[1], [0], [0], [1], [0, 0, 1, 1], [], []>} : vector<8x128xf32>, vector<128x128xf32>, vector<8x128xf32> -> vector<8x128xf32>
    %c0_3 = arith.constant 0 : index
    %c0_4 = arith.constant 0 : index
    %3 = vector.load %arg5[%c0_3, %c0_4] : memref<8x1xf32, #tpu.memory_space<vmem>>, vector<8x1xf32>
    %4 = vector.broadcast %3 : vector<8x1xf32> to vector<8x128xf32>
    %5 = arith.mulf %2, %4 : vector<8x128xf32>
    %c0_5 = arith.constant 0 : index
    %c0_6 = arith.constant 0 : index
    %6 = vector.load %arg6[%c0_5, %c0_6] : memref<1x128xf32, #tpu.memory_space<vmem>>, vector<1x128xf32>
    %7 = vector.broadcast %6 : vector<1x128xf32> to vector<8x128xf32>
    %8 = arith.addf %5, %7 : vector<8x128xf32>
    %c0_7 = arith.constant 0 : index
    %c0_8 = arith.constant 0 : index
    %9 = vector.load %arg7[%c0_7, %c0_8] : memref<8x128xf32, #tpu.memory_space<vmem>>, vector<8x128xf32>
    tpu.vector_store %arg7[%c0_7, %c0_8], %8 {strides = array<i32>} : memref<8x128xf32, #tpu.memory_space<vmem>>, vector<8x128xf32>,
    return
  }
  func.func @transform_0(%arg0: i32, %arg1: i32, %arg2: i32) -> (i32, i32) {
    %c0_i32 = arith.constant 0 : i32
    return %arg0, %arg2 : i32, i32
  }
  func.func @transform_1(%arg0: i32, %arg1: i32, %arg2: i32) -> (i32, i32) {
    %c0_i32 = arith.constant 0 : i32
    return %arg2, %arg1 : i32, i32
  }
  func.func @transform_2(%arg0: i32, %arg1: i32, %arg2: i32) -> (i32, i32) {
    %c0_i32 = arith.constant 0 : i32
    %c0_i32_0 = arith.constant 0 : i32
    return %arg0, %c0_i32 : i32, i32
  }
  func.func @transform_3(%arg0: i32, %arg1: i32, %arg2: i32) -> (i32, i32) {
    %c0_i32 = arith.constant 0 : i32
    %c0_i32_0 = arith.constant 0 : i32
    return %c0_i32, %arg1 : i32, i32
  }
  func.func @transform_4(%arg0: i32, %arg1: i32, %arg2: i32) -> (i32, i32) {
    %c0_i32 = arith.constant 0 : i32
    return %arg0, %arg1 : i32, i32
  }
}

</mosaic_0001>

<llo_original>
// kernel: tpu_custom_call.1
$region0: #{tpu_custom_call.1}
  #allocation0 [shape = 'u32[]', space=smem, size = 0x4, offset = 0x4, fixed_abs, tag = 'smem constant byte address 0x4 - core index']
  #allocation1 [shape = 'u32[144,128]{1,0:T(1,128)}', space=vmem, size = 0x12000, scoped, tag = 'internal scratch']
  #allocation2 [shape = 'f32[8,128]{1,0:T(8,128)}', space=vmem, size = 0x1000, scoped, tag = 'scratch operand']
  %s0 = inlined_call_operand.vmem [shape: f32[8,128], index: 0, kind: input, shape index: {}]
  %s1 = inlined_call_operand.hbm [shape: f32[128,128], index: 1, kind: input, shape index: {}]
  %s2 = inlined_call_operand.vmem [shape: f32[8,1], index: 2, kind: input, shape index: {}]
  %s3 = inlined_call_operand.vmem [shape: f32[1,128], index: 3, kind: input, shape index: {}]
  %s4 = inlined_call_operand.hbm [shape: f32[8,128], index: 4, kind: output, shape index: {}]
  %s5 = sld [smem:[#allocation0]]
  $region30: #{tpu_custom_call.1} parent=0
    _
  %s7 = ssub.s32 1, %s5
  %s8 = scalar_select 0, %s7, %s5
  $region1: #{tpu_custom_call.1} parent=0
    #allocation3 [shape = 'u8[65536]{0}', space=vmem, size = 0x10000, scoped, tag = 'input window, operand 1, single buffered']
    #allocation4 [shape = 's32[1]{0}', space=sflag, size = 0x4, scoped, tag = 'scoped memory for tpu_custom_call.1']
    #allocation5 [shape = 's32[1]{0}', space=sflag, size = 0x4, scoped, tag = 'scoped memory for tpu_custom_call.1']
    #allocation6 [shape = 'u8[4096]{0}', space=vmem, size = 0x1000, scoped, tag = 'output window, operand 0, single buffered']
    %9 = vsyncpa [#allocation4], 0
    %10 = vsyncpa [#allocation5], 0
    // Predicated region
    $region2: #{tpu_custom_call.1} parent=1 // pred_check
      _
    $region3: #{tpu_custom_call.1} parent=1 // pred_check_branch
      %12 = sbr.rel (0) target = $region5
    $region4: #{tpu_custom_call.1} parent=1 // pred_region
      _
    $region5: #{tpu_custom_call.1} parent=1 // pred_fallthru
      _
    // Predicated region
    $region6: #{tpu_custom_call.1} parent=1 // pred_check
      _
    $region7: #{tpu_custom_call.1} parent=1 // pred_check_branch
      %14 = sbr.rel (0) target = $region9
    $region8: #{tpu_custom_call.1} parent=1 // pred_region
      %s16 = ssub.s32 2048, 2048
      %17 = vsyncadd [#allocation4], %s16
      %s18 = sshll.u32 [#allocation3], 4
      %s19 = int_to_ptr.vmem [resolvable:$true] %s18
      %24 = dma.hbm_to_vmem [thread:$0]  %s1, 2048, %s19, [#allocation4], 128, 128, 8
    $region9: #{tpu_custom_call.1} parent=1 // pred_fallthru
      _
    // Predicated region
    $region10: #{tpu_custom_call.1} parent=1 // pred_check
      _
    $region11: #{tpu_custom_call.1} parent=1 // pred_check_branch
      %26 = sbr.rel (0) target = $region13
    $region12: #{tpu_custom_call.1} parent=1 // pred_region
      _
    $region13: #{tpu_custom_call.1} parent=1 // pred_fallthru
      _
    // Predicated region
    $region14: #{tpu_custom_call.1} parent=1 // pred_check
      _
    $region15: #{tpu_custom_call.1} parent=1 // pred_check_branch
      %28 = sbr.rel (0) target = $region17
    $region16: #{tpu_custom_call.1} parent=1 // pred_region
      _
    $region17: #{tpu_custom_call.1} parent=1 // pred_fallthru
      _
    // Predicated region
    $region18: #{tpu_custom_call.1} parent=1 // pred_check
      _
    $region19: #{tpu_custom_call.1} parent=1 // pred_check_branch
      %30 = sbr.rel (0) target = $region21
    $region20: #{tpu_custom_call.1} parent=1 // pred_region
      %31 = dma.done [#allocation4], 2048
    $region21: #{tpu_custom_call.1} parent=1 // pred_fallthru
      _
    %v32 = vld [vmem:[%s0] sm:$0xff]
    %v33 = vld [vmem:[#allocation3] sm:$0xff]
    %v34 = vld [vmem:[#allocation3 + $0x8] sm:$0xff]
    %v35 = vld [vmem:[#allocation3 + $0x10] sm:$0xff]
    %v36 = vld [vmem:[#allocation3 + $0x18] sm:$0xff]
    %v37 = vld [vmem:[#allocation3 + $0x20] sm:$0xff]
    %v38 = vld [vmem:[#allocation3 + $0x28] sm:$0xff]
    %v39 = vld [vmem:[#allocation3 + $0x30] sm:$0xff]
    %v40 = vld [vmem:[#allocation3 + $0x38] sm:$0xff]
    %v41 = vld [vmem:[#allocation3 + $0x40] sm:$0xff]
    %v42 = vld [vmem:[#allocation3 + $0x48] sm:$0xff]
    %v43 = vld [vmem:[#allocation3 + $0x50] sm:$0xff]
    %v44 = vld [vmem:[#allocation3 + $0x58] sm:$0xff]
    %v45 = vld [vmem:[#allocation3 + $0x60] sm:$0xff]
    %v46 = vld [vmem:[#allocation3 + $0x68] sm:$0xff]
    %v47 = vld [vmem:[#allocation3 + $0x70] sm:$0xff]
    %v48 = vld [vmem:[#allocation3 + $0x78] sm:$0xff]
    %49 = vmatprep.subr.mxu0 0.0
    %50 = vmatpush1.msra.mxu0 %v33
    %51 = vmatprep.subr.mxu0 0.0
    %52 = vmatpush1.msra.mxu0 %v34
    %53 = vmatprep.subr.mxu0 0.0
    %54 = vmatpush1.msra.mxu0 %v35
    %55 = vmatprep.subr.mxu0 0.0
    %56 = vmatpush1.msra.mxu0 %v36
    %57 = vmatprep.subr.mxu0 0.0
    %58 = vmatpush1.msra.mxu0 %v37
    %59 = vmatprep.subr.mxu0 0.0
    %60 = vmatpush1.msra.mxu0 %v38
    %61 = vmatprep.subr.mxu0 0.0
    %62 = vmatpush1.msra.mxu0 %v39
    %63 = vmatprep.subr.mxu0 0.0
    %64 = vmatpush1.msra.mxu0 %v40
    %65 = vmatprep.subr.mxu0 0.0
    %66 = vmatpush1.msra.mxu0 %v41
    %67 = vmatprep.subr.mxu0 0.0
    %68 = vmatpush1.msra.mxu0 %v42
    %69 = vmatprep.subr.mxu0 0.0
    %70 = vmatpush1.msra.mxu0 %v43
    %71 = vmatprep.subr.mxu0 0.0
    %72 = vmatpush1.msra.mxu0 %v44
    %73 = vmatprep.subr.mxu0 0.0
    %74 = vmatpush1.msra.mxu0 %v45
    %75 = vmatprep.subr.mxu0 0.0
    %76 = vmatpush1.msra.mxu0 %v46
    %77 = vmatprep.subr.mxu0 0.0
    %78 = vmatpush1.msra.mxu0 %v47
    %79 = vmatprep.subr.mxu0 0.0
    %80 = vmatpush1.msra.mxu0 %v48
    %81 = vmatprep.subr.mxu0 0.0
    %82 = vmatpush1.msra.mxu0 0.0
    %83 = vmatprep.subr.mxu0 0.0
    %84 = vmatpush1.msra.mxu0 0.0
    %85 = vmatprep.subr.mxu0 0.0
    %86 = vmatpush1.msra.mxu0 0.0
    %87 = vmatprep.subr.mxu0 0.0
    %88 = vmatpush1.msra.mxu0 0.0
    %89 = vmatprep.subr.mxu0 0.0
    %90 = vmatpush1.msra.mxu0 0.0
    %91 = vmatprep.subr.mxu0 0.0
    %92 = vmatpush1.msra.mxu0 0.0
    %93 = vmatprep.subr.mxu0 0.0
    %94 = vmatpush1.msra.mxu0 0.0
    %95 = vmatprep.subr.mxu0 0.0
    %96 = vmatpush1.msra.mxu0 0.0
    %97 = vmatprep.subr.mxu0 0.0
    %98 = vmatpush1.msra.mxu0 0.0
    %99 = vmatprep.subr.mxu0 0.0
    %100 = vmatpush1.msra.mxu0 0.0
    %101 = vmatprep.subr.mxu0 0.0
    %102 = vmatpush1.msra.mxu0 0.0
    %103 = vmatprep.subr.mxu0 0.0
    %104 = vmatpush1.msra.mxu0 0.0
    %105 = vmatprep.subr.mxu0 0.0
    %106 = vmatpush1.msra.mxu0 0.0
    %107 = vmatprep.subr.mxu0 0.0
    %108 = vmatpush1.msra.mxu0 0.0
    %109 = vmatprep.subr.mxu0 0.0
    %110 = vmatpush1.msra.mxu0 0.0
    %111 = vmatprep.subr.mxu0 0.0
    %112 = vmatpush1.msra.mxu0 0.0
    %113 = vmatprep.mubr.f32.mxu0 0.0
    %114 = vmatmul.mubr.f32.gmra.mrb[0].mxu0 %v32
    %v115 = vpop.f32.mrb[0].mxu0
    %v116 = vadd.f32 0.0, %v115
    %v117 = vpop.f32.mrb[0].mxu0
    %118 = vdwg.mxu0
    %v119 = vld [vmem:[%s2] sm:$0xff]
    %121 = vset.pattern.permute.xlu0 0
    %122 = vperm.xlu0 %121, %v119
    %v123 = vpop.permute.xlu0 %122
    %v125 = vmul.f32 %v116, %v123
    %v126 = vld [vmem:[%s3] sm:$0x1]
    %v128 = vlaneseq
    %v129 = vshrl.u32 %v128, 7
    %v130 = vsub.s32 0, %v129
    %v131 = vrot.slane %v126, %v130
    %v133 = vadd.f32 %v125, %v131
    %134 = vst [vmem:[#allocation6] sm:$0xff] %v133
    // Predicated region
    $region22: #{tpu_custom_call.1} parent=1 // pred_check
      _
    $region23: #{tpu_custom_call.1} parent=1 // pred_check_branch
      %136 = sbr.rel (0) target = $region25
    $region24: #{tpu_custom_call.1} parent=1 // pred_region
      %s138 = ssub.s32 128, 128
      %139 = vsyncadd [#allocation5], %s138
      %s141 = sshll.u32 [#allocation6], 4
      %s142 = int_to_ptr.vmem [resolvable:$true] %s141
      %144 = dma.vmem_to_hbm [thread:$0]  %s142, 128, %s4, [#allocation5]
    $region25: #{tpu_custom_call.1} parent=1 // pred_fallthru
      _
    // Predicated region
    $region26: #{tpu_custom_call.1} parent=1 // pred_check
      _
    $region27: #{tpu_custom_call.1} parent=1 // pred_check_branch
      %146 = sbr.rel (0) target = $region29
    $region28: #{tpu_custom_call.1} parent=1 // pred_region
      %147 = dma.done [#allocation5], 128
    $region29: #{tpu_custom_call.1} parent=1 // pred_fallthru
      _
    %148 = vsyncpa [#allocation4], 1
    %149 = vsyncpa [#allocation5], 1

</llo_original>
